<compile_context>
chip_gen: v7x
topology: tpu7x:2x2x1
jax: 0.10.0
libtpu: 0.0.40
codegen_flags: <defaults>
</compile_context>

<pallas_src>
import functools
import math

import jax
import jax.numpy as jnp
from jax.experimental import pallas as pl
from jax.experimental.pallas import tpu as pltpu


# ----------------------------------------------------------------------------
# Pallas kernel: fully fused per-image MultiBox losses
# ----------------------------------------------------------------------------
def _multibox_kernel(conf_ref, conft_ref, locd_ref, loct_ref, out_ref,
                     *, negpos_ratio):
    conf = conf_ref[...]                           # (Bt, C, P) f32
    tgt = conft_ref[:, 0, :]                       # (Bt, P) i32 (sublane squeezed)
    Bt, C, P = conf.shape

    # --- per-prior cross entropy:  logsumexp_c(conf) - conf[target] ----------
    m = jnp.max(conf, axis=1)                                          # (Bt,P)
    lse = m + jnp.log(jnp.sum(jnp.exp(conf - m[:, None, :]), axis=1))  # (Bt,P)
    cls_ids = jax.lax.broadcasted_iota(jnp.int32, conf.shape, 1)       # (Bt,C,P)
    gathered = jnp.sum(jnp.where(cls_ids == tgt[:, None, :], conf, 0.0),
                       axis=1)                                         # (Bt,P)
    ce = lse - gathered                                                # (Bt,P)

    pos = tgt > 0                                                      # (Bt,P)

    # --- pos-masked SmoothL1 (beta=1), reduced to a per-image scalar ---------
    diff = locd_ref[...] - loct_ref[...]                               # (Bt,4,P)
    ad = jnp.abs(diff)
    sl1 = jnp.where(ad < 1.0, 0.5 * ad * ad, ad - 0.5)
    l1_prior = jnp.sum(sl1, axis=1)                                    # (Bt,P)
    l1_sum = jnp.sum(jnp.where(pos, l1_prior, 0.0),
                     axis=1, keepdims=True)                            # (Bt,1)

    # --- hard-negative-mining rank (stable descending rank of cmine) ---------
    #   rank_j = #{i : c_i > c_j} + #{i < j : c_i == c_j}
    # Single prior tile: pairwise compare + sublane count-reduce (no MXU).
    # TODO(synk): at P~8732 use threshold selection instead of the (P,P) matrix.
    cmine = jnp.where(pos, 0.0, ce)                                    # (Bt,P)
    tri = (jax.lax.broadcasted_iota(jnp.int32, (P, 1), 0)
           < jax.lax.broadcasted_iota(jnp.int32, (1, P), 1))           # (P,P)
    c_col = cmine[:, :, None]               # (Bt,P,1) lane->sublane relayout
    c_row = cmine[:, None, :]               # (Bt,1,P)
    beats = (c_col > c_row) | ((c_col == c_row) & tri[None])           # (Bt,P,P)
    rank = jnp.sum(beats.astype(jnp.float32), axis=1)                  # (Bt,P)

    # --- fused hard-negative selection + final per-image reductions ----------
    num_pos = jnp.sum(pos.astype(jnp.float32), axis=1, keepdims=True)  # (Bt,1)
    num_neg = jnp.minimum(float(negpos_ratio) * num_pos, float(P - 1)) # (Bt,1)
    keep = pos | (rank < num_neg)                                      # (Bt,P)
    ce_sum = jnp.sum(jnp.where(keep, ce, 0.0), axis=1, keepdims=True)  # (Bt,1)

    # Pack the three per-image scalars into rows 0/1/2 of a single lane-dense
    # (Bt, 8, 128) output block (one unmasked store, one output DMA).
    row = jax.lax.broadcasted_iota(jnp.int32, out_ref.shape, 1)
    out_ref[...] = jnp.where(row == 0, l1_sum[:, :, None],
                   jnp.where(row == 1, ce_sum[:, :, None],
                             num_pos[:, :, None]))


def pallas_multibox_losses(conf_cp, conf_ti, loc_dp, loc_tp, negpos_ratio):
    """Returns per-image (l1_sum, keep-masked ce_sum, num_pos), each shape (B,)."""
    B, C, P = conf_cp.shape

    # Batch tile: largest divisor of B that is <= 8, then halved until the grid
    # has >= 2 steps (so the "parallel" axis can span both v7x TensorCores).
    bt = math.gcd(B, 8)
    while bt > 1 and B // bt < 2:
        bt //= 2
    grid = (B // bt,)

    kernel = functools.partial(_multibox_kernel, negpos_ratio=negpos_ratio)

    out = pl.pallas_call(
        kernel,
        out_shape=jax.ShapeDtypeStruct((B, 8, 128), jnp.float32),
        grid=grid,
        in_specs=[pl.BlockSpec((bt, C, P), lambda g: (g, 0, 0)),
                  pl.BlockSpec((bt, 1, P), lambda g: (g, 0, 0)),
                  pl.BlockSpec((bt, 4, P), lambda g: (g, 0, 0)),
                  pl.BlockSpec((bt, 4, P), lambda g: (g, 0, 0))],
        out_specs=pl.BlockSpec((bt, 8, 128), lambda g: (g, 0, 0)),
        compiler_params=pltpu.CompilerParams(
            dimension_semantics=("parallel",),
            vmem_limit_bytes=32 * 1024 * 1024),
    )(conf_cp, conf_ti, loc_dp, loc_tp)

    return out[:, 0, 0], out[:, 1, 0], out[:, 2, 0]


# ----------------------------------------------------------------------------
# Matching glue (tiny num_obj; plain JAX)
# ----------------------------------------------------------------------------
def _point_form(boxes):
    return jnp.concatenate(
        [boxes[:, :2] - boxes[:, 2:] / 2, boxes[:, :2] + boxes[:, 2:] / 2], axis=1)


def _jaccard(box_a, box_b):
    max_xy = jnp.minimum(box_a[:, None, 2:], box_b[None, :, 2:])
    min_xy = jnp.maximum(box_a[:, None, :2], box_b[None, :, :2])
    inter = jnp.maximum(max_xy - min_xy, 0.0)
    inter = inter[:, :, 0] * inter[:, :, 1]
    area_a = ((box_a[:, 2] - box_a[:, 0]) * (box_a[:, 3] - box_a[:, 1]))[:, None]
    area_b = ((box_b[:, 2] - box_b[:, 0]) * (box_b[:, 3] - box_b[:, 1]))[None, :]
    return inter / (area_a + area_b - inter)


def _encode(matched, priors, variances):
    g_cxcy = (matched[:, :2] + matched[:, 2:]) / 2 - priors[:, :2]
    g_cxcy = g_cxcy / (variances[0] * priors[:, 2:])
    g_wh = (matched[:, 2:] - matched[:, :2]) / priors[:, 2:]
    g_wh = jnp.log(g_wh) / variances[1]
    return jnp.concatenate([g_cxcy, g_wh], axis=1)


def _match_single(truths, labels, priors, threshold, variances):
    num_obj = truths.shape[0]
    overlaps = _jaccard(truths, _point_form(priors))          # (num_obj, P)
    best_prior_idx = jnp.argmax(overlaps, axis=1)              # (num_obj,)
    best_truth_overlap = jnp.max(overlaps, axis=0)             # (P,)
    best_truth_idx = jnp.argmax(overlaps, axis=0)              # (P,)
    best_truth_overlap = best_truth_overlap.at[best_prior_idx].set(2.0)
    best_truth_idx = best_truth_idx.at[best_prior_idx].set(
        jnp.arange(num_obj, dtype=best_truth_idx.dtype))
    matches = truths[best_truth_idx]                           # (P, 4)
    conf = labels[best_truth_idx].astype(jnp.int32)
    conf = jnp.where(best_truth_overlap < threshold, 0, conf)
    loc = _encode(matches, priors, variances)
    return loc, conf


# ----------------------------------------------------------------------------
# MultiBoxLoss forward
# ----------------------------------------------------------------------------
def multibox_loss(loc_data, conf_data, priors, targets,
                  num_classes, overlap_thresh=0.5, negpos_ratio=3,
                  variances=(0.1, 0.2)):
    B, P, _ = loc_data.shape

    def match_one(target):
        return _match_single(target[:, :4], target[:, 4], priors,
                             overlap_thresh, variances)

    loc_t, conf_t = jax.vmap(match_one)(targets)               # (B,P,4), (B,P)

    # Re-layout so the prior axis is lane-dense (last dim).
    # TODO(synk): at real SSD sizes emit prior-last activations upstream (or
    #             use CompilerParams(allow_input_fusion=...)/in-kernel
    #             pltpu.einshape) and keep conf/loc in bf16 in HBM to avoid
    #             this extra HBM pass.
    conf_cp = jnp.transpose(conf_data, (0, 2, 1)).astype(jnp.float32)   # (B,C,P)
    loc_dp = jnp.transpose(loc_data, (0, 2, 1)).astype(jnp.float32)     # (B,4,P)
    loc_tp = jnp.transpose(loc_t, (0, 2, 1)).astype(jnp.float32)        # (B,4,P)
    conf_ti = conf_t[:, None, :].astype(jnp.int32)                      # (B,1,P)

    l1_sum, ce_sum, num_pos = pallas_multibox_losses(
        conf_cp, conf_ti, loc_dp, loc_tp, negpos_ratio)

    N = jnp.sum(num_pos)       # NaN/Inf if a batch has zero positives (matches torch)
    loss_l = jnp.sum(l1_sum) / N
    loss_c = jnp.sum(ce_sum) / N
    return loss_l, loss_c


# ----------------------------------------------------------------------------
# Pure-JAX reference (sanity check of the fused kernel)
# ----------------------------------------------------------------------------
def multibox_loss_ref(loc_data, conf_data, priors, targets,
                      num_classes, overlap_thresh=0.5, negpos_ratio=3,
                      variances=(0.1, 0.2)):
    B, P, _ = loc_data.shape

    def match_one(target):
        return _match_single(target[:, :4], target[:, 4], priors,
                             overlap_thresh, variances)

    loc_t, conf_t = jax.vmap(match_one)(targets)
    pos = conf_t > 0

    diff = loc_data - loc_t
    ad = jnp.abs(diff)
    sl1 = jnp.where(ad < 1.0, 0.5 * ad * ad, ad - 0.5).sum(-1)
    loss_l = jnp.sum(jnp.where(pos, sl1, 0.0))

    ce = (jax.nn.logsumexp(conf_data, axis=-1)
          - jnp.take_along_axis(conf_data, conf_t[..., None].astype(jnp.int32),
                                axis=-1)[..., 0])
    lmine = jnp.where(pos, 0.0, ce)
    loss_idx = jnp.argsort(-lmine, axis=1)           # descending, stable
    idx_rank = jnp.argsort(loss_idx, axis=1)
    num_pos = jnp.sum(pos, axis=1)
    num_neg = jnp.minimum(negpos_ratio * num_pos, P - 1)
    neg = idx_rank < num_neg[:, None]
    keep = pos | neg

    N = jnp.sum(num_pos).astype(jnp.float32)
    return loss_l / N, jnp.sum(jnp.where(keep, ce, 0.0)) / N


# ----------------------------------------------------------------------------
if __name__ == "__main__":
    # MultiBoxLoss(num_classes=4, overlap_thresh=0.5, prior_for_matching=True,
    #              bkg_label=0, neg_mining=True, neg_pos=3, neg_overlap=0.5,
    #              encode_target=False)  -- hyperparameters only, no weights.
    B, P, C, num_obj = 2, 128, 4, 3

    key = jax.random.PRNGKey(0)
    k1, k2, k3, k4, k5, k6, k7 = jax.random.split(key, 7)

    # priors in center-size form
    cxcy = jax.random.uniform(k1, (P, 2), minval=0.2, maxval=0.8)
    wh = jax.random.uniform(k2, (P, 2), minval=0.1, maxval=0.4)
    priors = jnp.concatenate([cxcy, wh], axis=1).astype(jnp.float32)

    # ground-truth boxes (point form) + labels in [1, C-1]
    t_cxcy = jax.random.uniform(k3, (B, num_obj, 2), minval=0.3, maxval=0.7)
    t_wh = jax.random.uniform(k4, (B, num_obj, 2), minval=0.1, maxval=0.3)
    t_boxes = jnp.concatenate([t_cxcy - t_wh / 2, t_cxcy + t_wh / 2], axis=-1)
    t_labels = jax.random.randint(k5, (B, num_obj, 1), 1, C).astype(jnp.float32)
    targets = jnp.concatenate([t_boxes, t_labels], axis=-1)     # (B, num_obj, 5)

    # network predictions
    loc_data = 0.1 * jax.random.normal(k6, (B, P, 4), dtype=jnp.float32)
    conf_data = jax.random.normal(k7, (B, P, C), dtype=jnp.float32)

    loss_fn = jax.jit(functools.partial(multibox_loss, num_classes=C))
    loss_l, loss_c = loss_fn(loc_data, conf_data, priors, targets)
    jax.block_until_ready((loss_l, loss_c))

    ref_l, ref_c = multibox_loss_ref(loc_data, conf_data, priors, targets, C)
    assert jnp.allclose(loss_l, ref_l, atol=1e-4, rtol=1e-4), (loss_l, ref_l)
    assert jnp.allclose(loss_c, ref_c, atol=1e-4, rtol=1e-4), (loss_c, ref_c)

    print("KERNEL_OK")
</pallas_src>

<mosaic_0001>
module attributes {stable_mosaic.version = 11 : i64} {
  func.func @_multibox_kernel(%arg0: i32, %arg1: memref<1x4x128xf32, #tpu.memory_space<vmem>>, %arg2: memref<1x1x128xi32, #tpu.memory_space<vmem>>, %arg3: memref<1x4x128xf32, #tpu.memory_space<vmem>>, %arg4: memref<1x4x128xf32, #tpu.memory_space<vmem>>, %arg5: memref<1x8x128xf32, #tpu.memory_space<vmem>>) attributes {dimension_semantics = [#tpu.dimension_semantics<parallel>], iteration_bounds = array<i64: 2>, scalar_prefetch = 0 : i64, scratch_operands = 0 : i64, tpu.core_type = #tpu.core_type<tc>, window_params = [{transform_indices = @transform_0, window_bounds = array<i64: 1, 4, 128>}, {transform_indices = @transform_1, window_bounds = array<i64: 1, 1, 128>}, {transform_indices = @transform_2, window_bounds = array<i64: 1, 4, 128>}, {transform_indices = @transform_3, window_bounds = array<i64: 1, 4, 128>}, {transform_indices = @transform_4, window_bounds = array<i64: 1, 8, 128>}]} {
    %c0 = arith.constant 0 : index
    %c0_0 = arith.constant 0 : index
    %c0_1 = arith.constant 0 : index
    %0 = vector.load %arg1[%c0, %c0_0, %c0_1] : memref<1x4x128xf32, #tpu.memory_space<vmem>>, vector<1x4x128xf32>
    %c0_2 = arith.constant 0 : index
    %c0_3 = arith.constant 0 : index
    %c0_4 = arith.constant 0 : index
    %1 = vector.load %arg2[%c0_2, %c0_3, %c0_4] : memref<1x1x128xi32, #tpu.memory_space<vmem>>, vector<1x1x128xi32>
    %2 = vector.shape_cast %1 : vector<1x1x128xi32> to vector<1x128xi32>
    %cst = arith.constant dense<0xFF800000> : vector<1x128xf32>
    %3 = vector.multi_reduction <maximumf>, %0, %cst [1] : vector<1x4x128xf32> to vector<1x128xf32>
    %4 = vector.shape_cast %3 : vector<1x128xf32> to vector<1x1x128xf32>
    %5 = vector.broadcast %4 : vector<1x1x128xf32> to vector<1x4x128xf32>
    %6 = arith.subf %0, %5 : vector<1x4x128xf32>
    %7 = math.exp %6 : vector<1x4x128xf32>
    %cst_5 = arith.constant dense<0.000000e+00> : vector<1x128xf32>
    %8 = vector.multi_reduction <add>, %7, %cst_5 [1] : vector<1x4x128xf32> to vector<1x128xf32>
    %9 = math.log %8 : vector<1x128xf32>
    %10 = arith.addf %3, %9 : vector<1x128xf32>
    %11 = tpu.iota {dimensions = array<i32: 1>} : vector<1x4x128xi32>
    %12 = vector.shape_cast %2 : vector<1x128xi32> to vector<1x1x128xi32>
    %13 = vector.broadcast %12 : vector<1x1x128xi32> to vector<1x4x128xi32>
    %14 = arith.cmpi eq, %11, %13 : vector<1x4x128xi32>
    %cst_6 = arith.constant 0.000000e+00 : f32
    %15 = vector.broadcast %cst_6 : f32 to vector<1x4x128xf32>
    %16 = arith.select %14, %0, %15 : vector<1x4x128xi1>, vector<1x4x128xf32>
    %cst_7 = arith.constant dense<0.000000e+00> : vector<1x128xf32>
    %17 = vector.multi_reduction <add>, %16, %cst_7 [1] : vector<1x4x128xf32> to vector<1x128xf32>
    %18 = arith.subf %10, %17 : vector<1x128xf32>
    %c0_i32 = arith.constant 0 : i32
    %19 = vector.broadcast %c0_i32 : i32 to vector<1x128xi32>
    %20 = arith.cmpi sgt, %2, %19 : vector<1x128xi32>
    %c0_8 = arith.constant 0 : index
    %c0_9 = arith.constant 0 : index
    %c0_10 = arith.constant 0 : index
    %21 = vector.load %arg3[%c0_8, %c0_9, %c0_10] : memref<1x4x128xf32, #tpu.memory_space<vmem>>, vector<1x4x128xf32>
    %c0_11 = arith.constant 0 : index
    %c0_12 = arith.constant 0 : index
    %c0_13 = arith.constant 0 : index
    %22 = vector.load %arg4[%c0_11, %c0_12, %c0_13] : memref<1x4x128xf32, #tpu.memory_space<vmem>>, vector<1x4x128xf32>
    %23 = arith.subf %21, %22 : vector<1x4x128xf32>
    %24 = math.absf %23 : vector<1x4x128xf32>
    %cst_14 = arith.constant 1.000000e+00 : f32
    %25 = vector.broadcast %cst_14 : f32 to vector<1x4x128xf32>
    %26 = arith.cmpf olt, %24, %25 : vector<1x4x128xf32>
    %cst_15 = arith.constant 5.000000e-01 : f32
    %27 = vector.broadcast %cst_15 : f32 to vector<1x4x128xf32>
    %28 = arith.mulf %27, %24 : vector<1x4x128xf32>
    %29 = arith.mulf %28, %24 : vector<1x4x128xf32>
    %cst_16 = arith.constant 5.000000e-01 : f32
    %30 = vector.broadcast %cst_16 : f32 to vector<1x4x128xf32>
    %31 = arith.subf %24, %30 : vector<1x4x128xf32>
    %32 = arith.select %26, %29, %31 : vector<1x4x128xi1>, vector<1x4x128xf32>
    %cst_17 = arith.constant dense<0.000000e+00> : vector<1x128xf32>
    %33 = vector.multi_reduction <add>, %32, %cst_17 [1] : vector<1x4x128xf32> to vector<1x128xf32>
    %cst_18 = arith.constant 0.000000e+00 : f32
    %34 = vector.broadcast %cst_18 : f32 to vector<1x128xf32>
    %35 = arith.select %20, %33, %34 : vector<1x128xi1>, vector<1x128xf32>
    %cst_19 = arith.constant dense<0.000000e+00> : vector<1xf32>
    %36 = vector.multi_reduction <add>, %35, %cst_19 [1] : vector<1x128xf32> to vector<1xf32>
    %37 = vector.shape_cast %36 : vector<1xf32> to vector<1x1xf32>
    %cst_20 = arith.constant 0.000000e+00 : f32
    %38 = vector.broadcast %cst_20 : f32 to vector<1x128xf32>
    %39 = arith.select %20, %38, %18 : vector<1x128xi1>, vector<1x128xf32>
    %40 = tpu.iota {dimensions = array<i32: 0>} : vector<128x1xi32>
    %41 = tpu.iota {dimensions = array<i32: 1>} : vector<1x128xi32>
    %42 = vector.broadcast %40 : vector<128x1xi32> to vector<128x128xi32>
    %43 = vector.broadcast %41 : vector<1x128xi32> to vector<128x128xi32>
    %44 = arith.cmpi slt, %42, %43 : vector<128x128xi32>
    %45 = vector.shape_cast %39 : vector<1x128xf32> to vector<1x128x1xf32>
    %46 = vector.shape_cast %39 : vector<1x128xf32> to vector<1x1x128xf32>
    %47 = vector.broadcast %45 : vector<1x128x1xf32> to vector<1x128x128xf32>
    %48 = vector.broadcast %46 : vector<1x1x128xf32> to vector<1x128x128xf32>
    %49 = arith.cmpf ogt, %47, %48 : vector<1x128x128xf32>
    %50 = vector.broadcast %45 : vector<1x128x1xf32> to vector<1x128x128xf32>
    %51 = vector.broadcast %46 : vector<1x1x128xf32> to vector<1x128x128xf32>
    %52 = arith.cmpf oeq, %50, %51 : vector<1x128x128xf32>
    %53 = vector.shape_cast %44 : vector<128x128xi1> to vector<1x128x128xi1>
    %54 = arith.andi %52, %53 : vector<1x128x128xi1>
    %55 = arith.ori %49, %54 : vector<1x128x128xi1>
    %56 = arith.extui %55 : vector<1x128x128xi1> to vector<1x128x128xi32>
    %57 = arith.sitofp %56 : vector<1x128x128xi32> to vector<1x128x128xf32>
    %cst_21 = arith.constant dense<0.000000e+00> : vector<1x128xf32>
    %58 = vector.multi_reduction <add>, %57, %cst_21 [1] : vector<1x128x128xf32> to vector<1x128xf32>
    %59 = arith.extui %20 : vector<1x128xi1> to vector<1x128xi32>
    %60 = arith.sitofp %59 : vector<1x128xi32> to vector<1x128xf32>
    %cst_22 = arith.constant dense<0.000000e+00> : vector<1xf32>
    %61 = vector.multi_reduction <add>, %60, %cst_22 [1] : vector<1x128xf32> to vector<1xf32>
    %62 = vector.shape_cast %61 : vector<1xf32> to vector<1x1xf32>
    %cst_23 = arith.constant 3.000000e+00 : f32
    %63 = vector.broadcast %cst_23 : f32 to vector<1x1xf32>
    %64 = arith.mulf %63, %62 : vector<1x1xf32>
    %cst_24 = arith.constant 1.270000e+02 : f32
    %65 = vector.broadcast %cst_24 : f32 to vector<1x1xf32>
    %66 = arith.minimumf %64, %65 : vector<1x1xf32>
    %67 = vector.broadcast %66 : vector<1x1xf32> to vector<1x128xf32>
    %68 = arith.cmpf olt, %58, %67 : vector<1x128xf32>
    %69 = arith.ori %20, %68 : vector<1x128xi1>
    %cst_25 = arith.constant 0.000000e+00 : f32
    %70 = vector.broadcast %cst_25 : f32 to vector<1x128xf32>
    %71 = arith.select %69, %18, %70 : vector<1x128xi1>, vector<1x128xf32>
    %cst_26 = arith.constant dense<0.000000e+00> : vector<1xf32>
    %72 = vector.multi_reduction <add>, %71, %cst_26 [1] : vector<1x128xf32> to vector<1xf32>
    %73 = vector.shape_cast %72 : vector<1xf32> to vector<1x1xf32>
    %74 = tpu.iota {dimensions = array<i32: 1>} : vector<1x8x128xi32>
    %c0_i32_27 = arith.constant 0 : i32
    %75 = vector.broadcast %c0_i32_27 : i32 to vector<1x8x128xi32>
    %76 = arith.cmpi eq, %74, %75 : vector<1x8x128xi32>
    %77 = vector.shape_cast %37 : vector<1x1xf32> to vector<1x1x1xf32>
    %c1_i32 = arith.constant 1 : i32
    %78 = vector.broadcast %c1_i32 : i32 to vector<1x8x128xi32>
    %79 = arith.cmpi eq, %74, %78 : vector<1x8x128xi32>
    %80 = vector.shape_cast %73 : vector<1x1xf32> to vector<1x1x1xf32>
    %81 = vector.shape_cast %62 : vector<1x1xf32> to vector<1x1x1xf32>
    %82 = vector.shape_cast %80 : vector<1x1x1xf32> to vector<1x1x1xf32>
    %83 = vector.broadcast %82 : vector<1x1x1xf32> to vector<1x8x128xf32>
    %84 = vector.shape_cast %81 : vector<1x1x1xf32> to vector<1x1x1xf32>
    %85 = vector.broadcast %84 : vector<1x1x1xf32> to vector<1x8x128xf32>
    %86 = arith.select %79, %83, %85 : vector<1x8x128xi1>, vector<1x8x128xf32>
    %87 = vector.shape_cast %77 : vector<1x1x1xf32> to vector<1x1x1xf32>
    %88 = vector.broadcast %87 : vector<1x1x1xf32> to vector<1x8x128xf32>
    %89 = arith.select %76, %88, %86 : vector<1x8x128xi1>, vector<1x8x128xf32>
    %c0_28 = arith.constant 0 : index
    %c0_29 = arith.constant 0 : index
    %c0_30 = arith.constant 0 : index
    %90 = vector.load %arg5[%c0_28, %c0_29, %c0_30] : memref<1x8x128xf32, #tpu.memory_space<vmem>>, vector<1x8x128xf32>
    tpu.vector_store %arg5[%c0_28, %c0_29, %c0_30], %89 {strides = array<i32>} : memref<1x8x128xf32, #tpu.memory_space<vmem>>, vector<1x8x128xf32>,
    return
  }
  func.func @transform_0(%arg0: i32) -> (i32, i32, i32) {
    %c0_i32 = arith.constant 0 : i32
    %c0_i32_0 = arith.constant 0 : i32
    %c0_i32_1 = arith.constant 0 : i32
    return %arg0, %c0_i32, %c0_i32_0 : i32, i32, i32
  }
  func.func @transform_1(%arg0: i32) -> (i32, i32, i32) {
    %c0_i32 = arith.constant 0 : i32
    %c0_i32_0 = arith.constant 0 : i32
    %c0_i32_1 = arith.constant 0 : i32
    return %arg0, %c0_i32, %c0_i32_0 : i32, i32, i32
  }
  func.func @transform_2(%arg0: i32) -> (i32, i32, i32) {
    %c0_i32 = arith.constant 0 : i32
    %c0_i32_0 = arith.constant 0 : i32
    %c0_i32_1 = arith.constant 0 : i32
    return %arg0, %c0_i32, %c0_i32_0 : i32, i32, i32
  }
  func.func @transform_3(%arg0: i32) -> (i32, i32, i32) {
    %c0_i32 = arith.constant 0 : i32
    %c0_i32_0 = arith.constant 0 : i32
    %c0_i32_1 = arith.constant 0 : i32
    return %arg0, %c0_i32, %c0_i32_0 : i32, i32, i32
  }
  func.func @transform_4(%arg0: i32) -> (i32, i32, i32) {
    %c0_i32 = arith.constant 0 : i32
    %c0_i32_0 = arith.constant 0 : i32
    %c0_i32_1 = arith.constant 0 : i32
    return %arg0, %c0_i32, %c0_i32_0 : i32, i32, i32
  }
}

</mosaic_0001>

<llo_original>
// kernel: multibox_loss.1
$region0: #{multibox_loss.1}
  #allocation0 [shape = 'u32[]', space=smem, size = 0x4, offset = 0x4, fixed_abs, tag = 'smem constant byte address 0x4 - core index']
  #allocation1 [shape = 'u32[144,128]{1,0:T(1,128)}', space=vmem, size = 0x12000, scoped, tag = 'internal scratch']
  %s0 = inlined_call_operand.vmem [shape: f32[2,4,128], index: 0, kind: input, shape index: {}]
  %s1 = inlined_call_operand.vmem [shape: s32[2,1,128], index: 1, kind: input, shape index: {}]
  %s2 = inlined_call_operand.vmem [shape: f32[2,4,128], index: 2, kind: input, shape index: {}]
  %s3 = inlined_call_operand.vmem [shape: f32[2,4,128], index: 3, kind: input, shape index: {}]
  %s4 = inlined_call_operand.vmem [shape: f32[2,8,128], index: 4, kind: output, shape index: {}]
  %s5 = sld [smem:[#allocation0]]
  $region49: #{multibox_loss.1} parent=0
    _
  %s7 = ssub.s32 1, %s5
  %s8 = scalar_select 0, %s7, %s5
  loop: start=0, step=1, limit=4
  $region2: #{multibox_loss.1} parent=0 // loop_pre_header
    _
  $region3: #{multibox_loss.1} parent=0 // loop_header
    %s10 = sphi 0, %s14
    %p11 = scmp.ge.s32.totalorder %s10, 4
    %s20 = sphi 0, %s22
    %s23 = sphi 0, %s20
    %s24 = sphi 0, %s23
    %s40 = sphi 0, %s24
    %s46 = sphi 0, %s48
    %s49 = sphi 0, %s46
    %s50 = sphi 0, %s49
    %s66 = sphi 0, %s50
    %s72 = sphi 0, %s74
    %s75 = sphi 0, %s72
    %s76 = sphi 0, %s75
    %s92 = sphi 0, %s76
    %s98 = sphi 0, %s100
    %s101 = sphi 0, %s98
    %s102 = sphi 0, %s101
    %s118 = sphi 0, %s102
    %s124 = sphi 0, %s126
    %s127 = sphi 0, %s124
    %s128 = sphi 0, %s127
    %s144 = sphi 0, %s128
  $region4: #{multibox_loss.1} parent=0 // loop_header_branch
    %13 = sbr.rel (%p11) target = $region8
  $region5: #{multibox_loss.1} parent=0 // loop_body
    %s15 = ssub.s32 %s10, 1
    %s16 = ssub.s32 %s10, 2
    %s17 = sadd.s32 %s10, 1
    %s18 = ssub.s32 %s10, %s17
    %p19 = scmp.eq.s32.totalorder %s18, 0
    %s21 = sadd.s32 %s20, 1
    %s22 = scalar_select %p19, %s20, %s21
    %p25 = pneg %p19
    %p26 = scmp.eq.s32.totalorder %s10, 1
    %p27 = por %p25, %p26
    %p28 = scmp.ne.s32.totalorder %s20, %s23
    %p29 = scmp.eq.s32.totalorder %s10, 0
    %p30 = por %p28, %p29
    %p31 = scmp.ne.s32.totalorder %s20, %s23
    %p32 = scmp.eq.s32.totalorder %s15, 1
    %p33 = por %p31, %p32
    %p34 = scmp.ne.s32.totalorder %s23, %s24
    %p35 = scmp.eq.s32.totalorder %s15, 0
    %p36 = por %p34, %p35
    %p37 = scmp.ne.s32.totalorder %s23, %s24
    %p38 = scmp.eq.s32.totalorder %s16, 1
    %p39 = por %p37, %p38
    %p41 = scmp.ne.s32.totalorder %s24, %s40
    %p42 = scmp.eq.s32.totalorder %s16, 0
    %p43 = por %p41, %p42
    %s44 = ssub.s32 %s10, %s17
    %p45 = scmp.eq.s32.totalorder %s44, 0
    %s47 = sadd.s32 %s46, 1
    %s48 = scalar_select %p45, %s46, %s47
    %p51 = pneg %p45
    %p52 = scmp.eq.s32.totalorder %s10, 1
    %p53 = por %p51, %p52
    %p54 = scmp.ne.s32.totalorder %s46, %s49
    %p55 = scmp.eq.s32.totalorder %s10, 0
    %p56 = por %p54, %p55
    %p57 = scmp.ne.s32.totalorder %s46, %s49
    %p58 = scmp.eq.s32.totalorder %s15, 1
    %p59 = por %p57, %p58
    %p60 = scmp.ne.s32.totalorder %s49, %s50
    %p61 = scmp.eq.s32.totalorder %s15, 0
    %p62 = por %p60, %p61
    %p63 = scmp.ne.s32.totalorder %s49, %s50
    %p64 = scmp.eq.s32.totalorder %s16, 1
    %p65 = por %p63, %p64
    %p67 = scmp.ne.s32.totalorder %s50, %s66
    %p68 = scmp.eq.s32.totalorder %s16, 0
    %p69 = por %p67, %p68
    %s70 = ssub.s32 %s10, %s17
    %p71 = scmp.eq.s32.totalorder %s70, 0
    %s73 = sadd.s32 %s72, 1
    %s74 = scalar_select %p71, %s72, %s73
    %p77 = pneg %p71
    %p78 = scmp.eq.s32.totalorder %s10, 1
    %p79 = por %p77, %p78
    %p80 = scmp.ne.s32.totalorder %s72, %s75
    %p81 = scmp.eq.s32.totalorder %s10, 0
    %p82 = por %p80, %p81
    %p83 = scmp.ne.s32.totalorder %s72, %s75
    %p84 = scmp.eq.s32.totalorder %s15, 1
    %p85 = por %p83, %p84
    %p86 = scmp.ne.s32.totalorder %s75, %s76
    %p87 = scmp.eq.s32.totalorder %s15, 0
    %p88 = por %p86, %p87
    %p89 = scmp.ne.s32.totalorder %s75, %s76
    %p90 = scmp.eq.s32.totalorder %s16, 1
    %p91 = por %p89, %p90
    %p93 = scmp.ne.s32.totalorder %s76, %s92
    %p94 = scmp.eq.s32.totalorder %s16, 0
    %p95 = por %p93, %p94
    %s96 = ssub.s32 %s10, %s17
    %p97 = scmp.eq.s32.totalorder %s96, 0
    %s99 = sadd.s32 %s98, 1
    %s100 = scalar_select %p97, %s98, %s99
    %p103 = pneg %p97
    %p104 = scmp.eq.s32.totalorder %s10, 1
    %p105 = por %p103, %p104
    %p106 = scmp.ne.s32.totalorder %s98, %s101
    %p107 = scmp.eq.s32.totalorder %s10, 0
    %p108 = por %p106, %p107
    %p109 = scmp.ne.s32.totalorder %s98, %s101
    %p110 = scmp.eq.s32.totalorder %s15, 1
    %p111 = por %p109, %p110
    %p112 = scmp.ne.s32.totalorder %s101, %s102
    %p113 = scmp.eq.s32.totalorder %s15, 0
    %p114 = por %p112, %p113
    %p115 = scmp.ne.s32.totalorder %s101, %s102
    %p116 = scmp.eq.s32.totalorder %s16, 1
    %p117 = por %p115, %p116
    %p119 = scmp.ne.s32.totalorder %s102, %s118
    %p120 = scmp.eq.s32.totalorder %s16, 0
    %p121 = por %p119, %p120
    %s122 = ssub.s32 %s10, %s17
    %p123 = scmp.eq.s32.totalorder %s122, 0
    %s125 = sadd.s32 %s124, 1
    %s126 = scalar_select %p123, %s124, %s125
    %p129 = pneg %p123
    %p130 = scmp.eq.s32.totalorder %s10, 1
    %p131 = por %p129, %p130
    %p132 = scmp.ne.s32.totalorder %s124, %s127
    %p133 = scmp.eq.s32.totalorder %s10, 0
    %p134 = por %p132, %p133
    %p135 = scmp.ne.s32.totalorder %s124, %s127
    %p136 = scmp.eq.s32.totalorder %s15, 1
    %p137 = por %p135, %p136
    %p138 = scmp.ne.s32.totalorder %s127, %s128
    %p139 = scmp.eq.s32.totalorder %s15, 0
    %p140 = por %p138, %p139
    %p141 = scmp.ne.s32.totalorder %s127, %s128
    %p142 = scmp.eq.s32.totalorder %s16, 1
    %p143 = por %p141, %p142
    %p145 = scmp.ne.s32.totalorder %s128, %s144
    %p146 = scmp.eq.s32.totalorder %s16, 0
    %p147 = por %p145, %p146
    %p148 = scmp.le.s32.totalorder 1, %s10
    %p149 = scmp.lt.s32.totalorder %s10, 3
    %p150 = pnand %p148, %p149
    %p151 = pneg %p150
    // Predicated region
    $region9: #{multibox_loss.1} parent=5 // pred_check
      _
    $region10: #{multibox_loss.1} parent=5 // pred_check_branch
      %153 = sbr.rel (%p150) target = $region12
    $region11: #{multibox_loss.1} parent=5 // pred_region
      %s154 = ssub.s32 %s10, 1
    $region12: #{multibox_loss.1} parent=5 // pred_fallthru
      _
    %p155 = scmp.lt.s32.totalorder %s10, 2
    // Predicated region
    $region13: #{multibox_loss.1} parent=5 // pred_check
      %p156 = pneg %p155
    $region14: #{multibox_loss.1} parent=5 // pred_check_branch
      %158 = sbr.rel (%p156) target = $region16
    $region15: #{multibox_loss.1} parent=5 // pred_region
      // Predicated region
      $region17: #{multibox_loss.1} parent=15 // pred_check
        %p159 = pneg %p30
      $region18: #{multibox_loss.1} parent=15 // pred_check_branch
        %161 = sbr.rel (%p159) target = $region20
      $region19: #{multibox_loss.1} parent=15 // pred_region
        %p162 = scmp.lt.s32.totalorder %s10, 1
        %s163 = scalar_select %p162, %s10, 1
        %s164 = smul.addr %s163, 4
        %s165 = scalar_lea.vmem %s0, %s164
      $region20: #{multibox_loss.1} parent=15 // pred_fallthru
        _
      // Predicated region
      $region21: #{multibox_loss.1} parent=15 // pred_check
        %p166 = pneg %p56
      $region22: #{multibox_loss.1} parent=15 // pred_check_branch
        %168 = sbr.rel (%p166) target = $region24
      $region23: #{multibox_loss.1} parent=15 // pred_region
        %p169 = scmp.lt.s32.totalorder %s10, 1
        %s170 = scalar_select %p169, %s10, 1
        %s171 = scalar_lea.vmem %s1, %s170
      $region24: #{multibox_loss.1} parent=15 // pred_fallthru
        _
      // Predicated region
      $region25: #{multibox_loss.1} parent=15 // pred_check
        %p172 = pneg %p82
      $region26: #{multibox_loss.1} parent=15 // pred_check_branch
        %174 = sbr.rel (%p172) target = $region28
      $region27: #{multibox_loss.1} parent=15 // pred_region
        %p175 = scmp.lt.s32.totalorder %s10, 1
        %s176 = scalar_select %p175, %s10, 1
        %s177 = smul.addr %s176, 4
        %s178 = scalar_lea.vmem %s2, %s177
      $region28: #{multibox_loss.1} parent=15 // pred_fallthru
        _
      // Predicated region
      $region29: #{multibox_loss.1} parent=15 // pred_check
        %p179 = pneg %p108
      $region30: #{multibox_loss.1} parent=15 // pred_check_branch
        %181 = sbr.rel (%p179) target = $region32
      $region31: #{multibox_loss.1} parent=15 // pred_region
        %p182 = scmp.lt.s32.totalorder %s10, 1
        %s183 = scalar_select %p182, %s10, 1
        %s184 = smul.addr %s183, 4
        %s185 = scalar_lea.vmem %s3, %s184
      $region32: #{multibox_loss.1} parent=15 // pred_fallthru
        _
    $region16: #{multibox_loss.1} parent=5 // pred_fallthru
      _
    %p186 = scmp.le.s32.totalorder 1, %s10
    %p187 = scmp.lt.s32.totalorder %s10, 3
    %p188 = pnand %p186, %p187
    %p189 = pneg %p188
    // Predicated region
    $region33: #{multibox_loss.1} parent=5 // pred_check
      _
    $region34: #{multibox_loss.1} parent=5 // pred_check_branch
      %191 = sbr.rel (%p188) target = $region36
    $region35: #{multibox_loss.1} parent=5 // pred_region
      %s192 = ssub.s32 %s10, 1
      %p193 = scmp.lt.s32.totalorder %s15, 1
      %s194 = scalar_select %p193, %s15, 1
      %s195 = smul.addr %s194, 4
      %s196 = scalar_lea.vmem %s0, %s195
      %p197 = pneg %p36
      %p198 = pneg %p33
      %p199 = scmp.lt.s32.totalorder %s15, 1
      %s200 = scalar_select %p199, %s15, 1
      %s201 = scalar_lea.vmem %s1, %s200
      %p202 = pneg %p62
      %p203 = pneg %p59
      %p204 = scmp.lt.s32.totalorder %s15, 1
      %s205 = scalar_select %p204, %s15, 1
      %s206 = smul.addr %s205, 4
      %s207 = scalar_lea.vmem %s2, %s206
      %p208 = pneg %p88
      %p209 = pneg %p85
      %p210 = scmp.lt.s32.totalorder %s15, 1
      %s211 = scalar_select %p210, %s15, 1
      %s212 = smul.addr %s211, 4
      %s213 = scalar_lea.vmem %s3, %s212
      %p214 = pneg %p114
      %p215 = pneg %p111
      %p216 = pneg %p140
      %p217 = pneg %p137
      %p218 = scmp.lt.s32.totalorder %s15, 1
      %s219 = scalar_select %p218, %s15, 1
      %s220 = smul.addr %s219, 8
      %s221 = scalar_lea.vmem %s4, %s220
      %p222 = scmp.lt.s32.totalorder %s15, 1
      %s223 = scalar_select %p222, %s15, 1
      %s224 = smul.addr %s223, 4
      %s225 = scalar_lea.vmem %s0, %s224
      %p226 = scmp.lt.s32.totalorder %s15, 1
      %s227 = scalar_select %p226, %s15, 1
      %s228 = scalar_lea.vmem %s1, %s227
      %p229 = scmp.lt.s32.totalorder %s15, 1
      %s230 = scalar_select %p229, %s15, 1
      %s231 = smul.addr %s230, 4
      %s232 = scalar_lea.vmem %s2, %s231
      %p233 = scmp.lt.s32.totalorder %s15, 1
      %s234 = scalar_select %p233, %s15, 1
      %s235 = smul.addr %s234, 4
      %s236 = scalar_lea.vmem %s3, %s235
      %p237 = scmp.lt.s32.totalorder %s15, 1
      %s238 = scalar_select %p237, %s15, 1
      %s239 = smul.addr %s238, 8
      %s240 = scalar_lea.vmem %s4, %s239
      %v241 = vld [vmem:[%s225] sm:$0xf]
      %v242 = vld [vmem:[%s228] sm:$0x1]
      %vm243 = vcmask 1043456
      %v244 = vsel %vm243, %v241, -inf
      %v245 = vrot.slane %v244, 4
      %v246 = vmax.f32 %v244, %v245
      %v247 = vrot.slane %v246, 2
      %v248 = vmax.f32 %v246, %v247
      %v249 = vrot.slane %v248, 1
      %v250 = vmax.f32 %v248, %v249
      %v251 = vsub.f32 %v241, %v250
      %v252 = vmul.f32 %v251, 1.442695
      %v253 = vpow.pop %v252
      %v254 = vsel %vm243, %v253, 0.0
      %v255 = vrot.slane %v254, 4
      %v256 = vadd.f32 %v254, %v255
      %v257 = vrot.slane %v256, 2
      %v258 = vadd.f32 %v256, %v257
      %v259 = vrot.slane %v258, 1
      %v260 = vadd.f32 %v258, %v259
      %v261 = vlog2.pop %v260
      %v262 = vmul.f32 %v261, 0.6931472
      %v263 = vadd.f32 %v250, %v262
      %v264 = vlaneseq
      %v265 = vshrl.u32 %v264, 7
      %v266 = vlaneseq
      %v267 = vshrl.u32 %v266, 7
      %v268 = vsub.s32 0, %v267
      %v269 = vrot.slane %v242, %v268
      %vm270 = vcmp.eq.s32.totalorder %v265, %v269
      %v271 = vsel %vm270, %v241, 0.0
      %v272 = vsel %vm243, %v271, 0.0
      %v273 = vrot.slane %v272, 4
      %v274 = vadd.f32 %v272, %v273
      %v275 = vrot.slane %v274, 2
      %v276 = vadd.f32 %v274, %v275
      %v277 = vrot.slane %v276, 1
      %v278 = vadd.f32 %v276, %v277
      %v279 = vsub.f32 %v263, %v278
      %vm280 = vcmp.gt.s32.totalorder %v242, 0
      %v281 = vld [vmem:[%s232] sm:$0xf]
      %v282 = vld [vmem:[%s236] sm:$0xf]
      %v283 = vsub.f32 %v281, %v282
      %v284 = vand.u32 2147483647, %v283
      %vm285 = vcmp.lt.f32.partialorder %v284, 1.0
      %v286 = vmul.f32 %v284, 0.5
      %v287 = vmul.f32 %v286, %v284
      %v288 = vsub.f32 %v284, 0.5
      %v289 = vsel %vm285, %v287, %v288
      %v290 = vsel %vm243, %v289, 0.0
      %v291 = vrot.slane %v290, 4
      %v292 = vadd.f32 %v290, %v291
      %v293 = vrot.slane %v292, 2
      %v294 = vadd.f32 %v292, %v293
      %v295 = vrot.slane %v294, 1
      %v296 = vadd.f32 %v294, %v295
      %v297 = vsel %vm280, %v296, 0.0
      %vm298 = vcmask 1040384
      %v299 = vsel %vm298, %v297, 0.0
      %300 = vadd.xlane.f32.xlu0 %v299
      %v301 = vpop.xlane.xlu0 %300
      %v302 = vsel %vm280, 0.0, %v279
      %v303 = vadd.s32 %v265, 8
      %v304 = vadd.s32 %v265, 16
      %v305 = vadd.s32 %v265, 24
      %v306 = vadd.s32 %v265, 32
      %v307 = vadd.s32 %v265, 40
      %v308 = vadd.s32 %v265, 48
      %v309 = vadd.s32 %v265, 56
      %v310 = vadd.s32 %v265, 64
      %v311 = vadd.s32 %v265, 72
      %v312 = vadd.s32 %v265, 80
      %v313 = vadd.s32 %v265, 88
      %v314 = vadd.s32 %v265, 96
      %v315 = vadd.s32 %v265, 104
      %v316 = vadd.s32 %v265, 112
      %v317 = vadd.s32 %v265, 120
      %v318 = vlaneseq
      %v319 = vand.u32 %v318, 127
      %vm320 = vcmp.lt.s32.totalorder %v265, %v319
      %vm321 = vcmp.lt.s32.totalorder %v303, %v319
      %vm322 = vcmp.lt.s32.totalorder %v304, %v319
      %vm323 = vcmp.lt.s32.totalorder %v305, %v319
      %vm324 = vcmp.lt.s32.totalorder %v306, %v319
      %vm325 = vcmp.lt.s32.totalorder %v307, %v319
      %vm326 = vcmp.lt.s32.totalorder %v308, %v319
      %vm327 = vcmp.lt.s32.totalorder %v309, %v319
      %vm328 = vcmp.lt.s32.totalorder %v310, %v319
      %vm329 = vcmp.lt.s32.totalorder %v311, %v319
      %vm330 = vcmp.lt.s32.totalorder %v312, %v319
      %vm331 = vcmp.lt.s32.totalorder %v313, %v319
      %vm332 = vcmp.lt.s32.totalorder %v314, %v319
      %vm333 = vcmp.lt.s32.totalorder %v315, %v319
      %vm334 = vcmp.lt.s32.totalorder %v316, %v319
      %vm335 = vcmp.lt.s32.totalorder %v317, %v319
      %v336 = vlaneseq
      %v337 = vshrl.u32 %v336, 7
      %v338 = vsub.s32 0, %v337
      %v339 = vrot.slane %v302, %v338
      %341 = vbcast.lane.b32.xlu0 %v339, 256
      %v342 = vpop.permute.xlu0 %341
      %s344 = sor.u32 256, 8
      %345 = vbcast.lane.b32.xlu0 %v339, %s344
      %v346 = vpop.permute.xlu0 %345
      %s348 = sor.u32 256, 16
      %349 = vbcast.lane.b32.xlu0 %v339, %s348
      %v350 = vpop.permute.xlu0 %349
      %s352 = sor.u32 256, 24
      %353 = vbcast.lane.b32.xlu0 %v339, %s352
      %v354 = vpop.permute.xlu0 %353
      %s356 = sor.u32 256, 32
      %357 = vbcast.lane.b32.xlu0 %v339, %s356
      %v358 = vpop.permute.xlu0 %357
      %s360 = sor.u32 256, 40
      %361 = vbcast.lane.b32.xlu0 %v339, %s360
      %v362 = vpop.permute.xlu0 %361
      %s364 = sor.u32 256, 48
      %365 = vbcast.lane.b32.xlu0 %v339, %s364
      %v366 = vpop.permute.xlu0 %365
      %s368 = sor.u32 256, 56
      %369 = vbcast.lane.b32.xlu0 %v339, %s368
      %v370 = vpop.permute.xlu0 %369
      %s372 = sor.u32 256, 64
      %373 = vbcast.lane.b32.xlu0 %v339, %s372
      %v374 = vpop.permute.xlu0 %373
      %s376 = sor.u32 256, 72
      %377 = vbcast.lane.b32.xlu0 %v339, %s376
      %v378 = vpop.permute.xlu0 %377
      %s380 = sor.u32 256, 80
      %381 = vbcast.lane.b32.xlu0 %v339, %s380
      %v382 = vpop.permute.xlu0 %381
      %s384 = sor.u32 256, 88
      %385 = vbcast.lane.b32.xlu0 %v339, %s384
      %v386 = vpop.permute.xlu0 %385
      %s388 = sor.u32 256, 96
      %389 = vbcast.lane.b32.xlu0 %v339, %s388
      %v390 = vpop.permute.xlu0 %389
      %s392 = sor.u32 256, 104
      %393 = vbcast.lane.b32.xlu0 %v339, %s392
      %v394 = vpop.permute.xlu0 %393
      %s396 = sor.u32 256, 112
      %397 = vbcast.lane.b32.xlu0 %v339, %s396
      %v398 = vpop.permute.xlu0 %397
      %s400 = sor.u32 256, 120
      %401 = vbcast.lane.b32.xlu0 %v339, %s400
      %v402 = vpop.permute.xlu0 %401
      %v404 = vlaneseq
      %v405 = vshrl.u32 %v404, 7
      %v406 = vsub.s32 0, %v405
      %v407 = vrot.slane %v302, %v406
      %vm409 = vcmp.gt.f32.partialorder %v342, %v407
      %vm410 = vcmp.gt.f32.partialorder %v346, %v407
      %vm411 = vcmp.gt.f32.partialorder %v350, %v407
      %vm412 = vcmp.gt.f32.partialorder %v354, %v407
      %vm413 = vcmp.gt.f32.partialorder %v358, %v407
      %vm414 = vcmp.gt.f32.partialorder %v362, %v407
      %vm415 = vcmp.gt.f32.partialorder %v366, %v407
      %vm416 = vcmp.gt.f32.partialorder %v370, %v407
      %vm417 = vcmp.gt.f32.partialorder %v374, %v407
      %vm418 = vcmp.gt.f32.partialorder %v378, %v407
      %vm419 = vcmp.gt.f32.partialorder %v382, %v407
      %vm420 = vcmp.gt.f32.partialorder %v386, %v407
      %vm421 = vcmp.gt.f32.partialorder %v390, %v407
      %vm422 = vcmp.gt.f32.partialorder %v394, %v407
      %vm423 = vcmp.gt.f32.partialorder %v398, %v407
      %vm424 = vcmp.gt.f32.partialorder %v402, %v407
      %vm425 = vcmp.eq.f32.partialorder %v342, %v407
      %vm426 = vcmp.eq.f32.partialorder %v346, %v407
      %vm427 = vcmp.eq.f32.partialorder %v350, %v407
      %vm428 = vcmp.eq.f32.partialorder %v354, %v407
      %vm429 = vcmp.eq.f32.partialorder %v358, %v407
      %vm430 = vcmp.eq.f32.partialorder %v362, %v407
      %vm431 = vcmp.eq.f32.partialorder %v366, %v407
      %vm432 = vcmp.eq.f32.partialorder %v370, %v407
      %vm433 = vcmp.eq.f32.partialorder %v374, %v407
      %vm434 = vcmp.eq.f32.partialorder %v378, %v407
      %vm435 = vcmp.eq.f32.partialorder %v382, %v407
      %vm436 = vcmp.eq.f32.partialorder %v386, %v407
      %vm437 = vcmp.eq.f32.partialorder %v390, %v407
      %vm438 = vcmp.eq.f32.partialorder %v394, %v407
      %vm439 = vcmp.eq.f32.partialorder %v398, %v407
      %vm440 = vcmp.eq.f32.partialorder %v402, %v407
      %vm441 = vmand %vm425, %vm320
      %vm442 = vmand %vm426, %vm321
      %vm443 = vmand %vm427, %vm322
      %vm444 = vmand %vm428, %vm323
      %vm445 = vmand %vm429, %vm324
      %vm446 = vmand %vm430, %vm325
      %vm447 = vmand %vm431, %vm326
      %vm448 = vmand %vm432, %vm327
      %vm449 = vmand %vm433, %vm328
      %vm450 = vmand %vm434, %vm329
      %vm451 = vmand %vm435, %vm330
      %vm452 = vmand %vm436, %vm331
      %vm453 = vmand %vm437, %vm332
      %vm454 = vmand %vm438, %vm333
      %vm455 = vmand %vm439, %vm334
      %vm456 = vmand %vm440, %vm335
      %vm457 = vmor %vm409, %vm441
      %vm458 = vmor %vm410, %vm442
      %vm459 = vmor %vm411, %vm443
      %vm460 = vmor %vm412, %vm444
      %vm461 = vmor %vm413, %vm445
      %vm462 = vmor %vm414, %vm446
      %vm463 = vmor %vm415, %vm447
      %vm464 = vmor %vm416, %vm448
      %vm465 = vmor %vm417, %vm449
      %vm466 = vmor %vm418, %vm450
      %vm467 = vmor %vm419, %vm451
      %vm468 = vmor %vm420, %vm452
      %vm469 = vmor %vm421, %vm453
      %vm470 = vmor %vm422, %vm454
      %vm471 = vmor %vm423, %vm455
      %vm472 = vmor %vm424, %vm456
      %v473 = vsel %vm457, 1, 0
      %v474 = vsel %vm458, 1, 0
      %v475 = vsel %vm459, 1, 0
      %v476 = vsel %vm460, 1, 0
      %v477 = vsel %vm461, 1, 0
      %v478 = vsel %vm462, 1, 0
      %v479 = vsel %vm463, 1, 0
      %v480 = vsel %vm464, 1, 0
      %v481 = vsel %vm465, 1, 0
      %v482 = vsel %vm466, 1, 0
      %v483 = vsel %vm467, 1, 0
      %v484 = vsel %vm468, 1, 0
      %v485 = vsel %vm469, 1, 0
      %v486 = vsel %vm470, 1, 0
      %v487 = vsel %vm471, 1, 0
      %v488 = vsel %vm472, 1, 0
      %v489 = vcvt.s32.f32 %v473
      %v490 = vcvt.s32.f32 %v474
      %v491 = vcvt.s32.f32 %v475
      %v492 = vcvt.s32.f32 %v476
      %v493 = vcvt.s32.f32 %v477
      %v494 = vcvt.s32.f32 %v478
      %v495 = vcvt.s32.f32 %v479
      %v496 = vcvt.s32.f32 %v480
      %v497 = vcvt.s32.f32 %v481
      %v498 = vcvt.s32.f32 %v482
      %v499 = vcvt.s32.f32 %v483
      %v500 = vcvt.s32.f32 %v484
      %v501 = vcvt.s32.f32 %v485
      %v502 = vcvt.s32.f32 %v486
      %v503 = vcvt.s32.f32 %v487
      %v504 = vcvt.s32.f32 %v488
      %v505 = vadd.f32 %v489, %v490
      %v506 = vadd.f32 %v505, %v491
      %v507 = vadd.f32 %v506, %v492
      %v508 = vadd.f32 %v507, %v493
      %v509 = vadd.f32 %v508, %v494
      %v510 = vadd.f32 %v509, %v495
      %v511 = vadd.f32 %v510, %v496
      %v512 = vadd.f32 %v511, %v497
      %v513 = vadd.f32 %v512, %v498
      %v514 = vadd.f32 %v513, %v499
      %v515 = vadd.f32 %v514, %v500
      %v516 = vadd.f32 %v515, %v501
      %v517 = vadd.f32 %v516, %v502
      %v518 = vadd.f32 %v517, %v503
      %v519 = vadd.f32 %v518, %v504
      %v520 = vrot.slane %v519, 4
      %v521 = vadd.f32 %v519, %v520
      %v522 = vrot.slane %v521, 2
      %v523 = vadd.f32 %v521, %v522
      %v524 = vrot.slane %v523, 1
      %v525 = vadd.f32 %v523, %v524
      %v526 = vsel %vm280, 1, 0
      %v527 = vcvt.s32.f32 %v526
      %v528 = vsel %vm298, %v527, 0.0
      %529 = vadd.xlane.f32.xlu0 %v528
      %v530 = vpop.xlane.xlu0 %529
      %v531 = vmul.f32 %v530, 3.0
      %v532 = vmin.f32 %v531, 127.0
      %vm533 = vcmp.lt.f32.partialorder %v525, %v532
      %vm534 = vmor %vm280, %vm533
      %v535 = vsel %vm534, %v279, 0.0
      %v536 = vsel %vm298, %v535, 0.0
      %537 = vadd.xlane.f32.xlu0 %v536
      %v538 = vpop.xlane.xlu0 %537
      %vm539 = vcmp.eq.s32.totalorder %v265, 0
      %vm540 = vcmp.eq.s32.totalorder %v265, 1
      %v541 = vlaneseq
      %v542 = vshrl.u32 %v541, 7
      %v543 = vsub.s32 0, %v542
      %v544 = vrot.slane %v538, %v543
      %v545 = vlaneseq
      %v546 = vshrl.u32 %v545, 7
      %v547 = vsub.s32 0, %v546
      %v548 = vrot.slane %v530, %v547
      %v549 = vsel %vm540, %v544, %v548
      %v550 = vlaneseq
      %v551 = vshrl.u32 %v550, 7
      %v552 = vsub.s32 0, %v551
      %v553 = vrot.slane %v301, %v552
      %v554 = vsel %vm539, %v553, %v549
      %555 = vst [vmem:[%s240] sm:$0xff] %v554
      %p556 = scmp.lt.s32.totalorder %s15, 1
      %s557 = scalar_select %p556, %s15, 1
      %s558 = smul.addr %s557, 8
      %s559 = scalar_lea.vmem %s4, %s558
      // Predicated region
      $region37: #{multibox_loss.1} parent=35 // pred_check
        %p560 = pneg %p137
      $region38: #{multibox_loss.1} parent=35 // pred_check_branch
        %562 = sbr.rel (%p560) target = $region40
      $region39: #{multibox_loss.1} parent=35 // pred_region
        _
      $region40: #{multibox_loss.1} parent=35 // pred_fallthru
        _
    $region36: #{multibox_loss.1} parent=5 // pred_fallthru
      _
    %p563 = scmp.le.s32.totalorder 2, %s10
    // Predicated region
    $region41: #{multibox_loss.1} parent=5 // pred_check
      %p564 = pneg %p563
    $region42: #{multibox_loss.1} parent=5 // pred_check_branch
      %566 = sbr.rel (%p564) target = $region44
    $region43: #{multibox_loss.1} parent=5 // pred_region
      %s567 = ssub.s32 %s10, 2
      // Predicated region
      $region45: #{multibox_loss.1} parent=43 // pred_check
        %p568 = pneg %p143
      $region46: #{multibox_loss.1} parent=43 // pred_check_branch
        %570 = sbr.rel (%p568) target = $region48
      $region47: #{multibox_loss.1} parent=43 // pred_region
        %p571 = scmp.lt.s32.totalorder %s16, 1
        %s572 = scalar_select %p571, %s16, 1
        %s573 = smul.addr %s572, 8
        %s574 = scalar_lea.vmem %s4, %s573
      $region48: #{multibox_loss.1} parent=43 // pred_fallthru
        _
    $region44: #{multibox_loss.1} parent=5 // pred_fallthru
      _
  $region6: #{multibox_loss.1} parent=0 // loop_footer
    %s14 = sadd.s32 1, %s10
  $region7: #{multibox_loss.1} parent=0 // loop_footer_branch
    %9 = sbr.rel target = $region3
  $region8: #{multibox_loss.1} parent=0 // loop_exit
    _

</llo_original>
